<compile_context>
chip_gen: v7x
topology: tpu7x:2x2x1
jax: 0.10.0
libtpu: 0.0.40
codegen_flags: <defaults>
</compile_context>

<pallas_src>
import jax
import jax.numpy as jnp
from jax.experimental import pallas as pl
from jax.experimental.pallas import tpu as pltpu


def _round_up(x, m):
    return ((x + m - 1) // m) * m


def _linear_bias_kernel(x_ref, w_ref, b_ref, o_ref, acc_ref):
    """Computes one (tm, tn) output tile; K is reduced over grid axis 2."""
    kk = pl.program_id(2)

    @pl.when(kk == 0)
    def _():
        acc_ref[...] = jnp.zeros_like(acc_ref)

    acc_ref[...] += jnp.dot(
        x_ref[...], w_ref[...], preferred_element_type=jnp.float32
    )

    @pl.when(kk == pl.num_programs(2) - 1)
    def _():
        o_ref[...] = (acc_ref[...] + b_ref[...]).astype(o_ref.dtype)


def _pick_tm(m):
    if m >= 1024:
        return 512
    if m >= 512:
        return 256
    if m >= 256:
        return 128
    return _round_up(m, 8)


def _pick_tk(k):
    # Only tile K when it is large AND the tile divides K exactly: a partial
    # (out-of-bounds) K tile would accumulate garbage into valid outputs.
    if k > 1024:
        for cand in (512, 256, 128):
            if k % cand == 0:
                return cand
    return k


def pallas_linear(x2d, w, b, *, out_dtype=jnp.float32):
    """y = x2d @ w + b with bf16 inputs and f32 accumulation.

    x2d: (M, K) f32    w: (K, N) f32    b: (N,) f32   ->   (M, N) out_dtype
    N is zero-padded to a multiple of 128 inside so stores are lane-dense; the
    padding is sliced off before returning.
    """
    M, K = x2d.shape
    K2, N = w.shape
    assert K == K2 and b.shape == (N,)

    n_pad = _round_up(N, 128)
    if n_pad != N:
        w = jnp.pad(w, ((0, 0), (0, n_pad - N)))
        b = jnp.pad(b, (0, n_pad - N))

    x_bf = x2d.astype(jnp.bfloat16)
    w_bf = w.astype(jnp.bfloat16)
    b2d = b.reshape(1, n_pad).astype(jnp.float32)

    tm = _pick_tm(M)
    tn = min(n_pad, 512)
    tk = _pick_tk(K)

    grid = (pl.cdiv(M, tm), pl.cdiv(n_pad, tn), pl.cdiv(K, tk))

    # Rough double-buffered VMEM budget; keep within v7x's 64 MiB.
    est = 2 * (tm * tk * 2 + tk * tn * 2 + tn * 4 + tm * tn * 4) + tm * tn * 4
    vmem_limit = int(min(max(2 * est, 32 * 1024 * 1024), 64 * 1024 * 1024))

    y = pl.pallas_call(
        _linear_bias_kernel,
        out_shape=jax.ShapeDtypeStruct((M, n_pad), out_dtype),
        grid_spec=pltpu.PrefetchScalarGridSpec(
            num_scalar_prefetch=0,
            grid=grid,
            in_specs=[
                pl.BlockSpec((tm, tk), lambda i, j, kk: (i, kk)),
                pl.BlockSpec((tk, tn), lambda i, j, kk: (kk, j)),
                pl.BlockSpec((1, tn), lambda i, j, kk: (0, j)),
            ],
            out_specs=pl.BlockSpec((tm, tn), lambda i, j, kk: (i, j)),
            scratch_shapes=[pltpu.VMEM((tm, tn), jnp.float32)],
        ),
        compiler_params=pltpu.CompilerParams(
            dimension_semantics=("parallel", "parallel", "arbitrary"),
            vmem_limit_bytes=vmem_limit,
        ),
    )(x_bf, w_bf, b2d)

    if n_pad != N:
        y = y[:, :N]
    return y


class MultiHeadAttentionProjections:
    """JAX/Pallas port of FCDet `_MultiHeadAttention` forward (Q/K/V projections)."""

    def __init__(self, d_k, d_v, d_model, n_heads, dropout=0.0, key=None):
        self.d_k = d_k
        self.d_v = d_v
        self.d_model = d_model
        self.n_heads = n_heads
        # dropout is accepted for signature parity but unused in the reference forward.

        if key is None:
            key = jax.random.PRNGKey(0)
        keys = jax.random.split(key, 6)
        bound = 1.0 / (d_model ** 0.5)

        def init_w(k, out_dim):
            return jax.random.uniform(
                k, (d_model, out_dim), jnp.float32, -bound, bound
            )

        def init_b(k, out_dim):
            return jax.random.uniform(k, (out_dim,), jnp.float32, -bound, bound)

        self.w_q = init_w(keys[0], d_k * n_heads)
        self.b_q = init_b(keys[1], d_k * n_heads)
        self.w_k = init_w(keys[2], d_k * n_heads)
        self.b_k = init_b(keys[3], d_k * n_heads)
        self.w_v = init_w(keys[4], d_v * n_heads)
        self.b_v = init_b(keys[5], d_v * n_heads)

        # Fused QKV params for the self-attention fast path (single launch).
        self.w_qkv = jnp.concatenate([self.w_q, self.w_k, self.w_v], axis=1)
        self.b_qkv = jnp.concatenate([self.b_q, self.b_k, self.b_v], axis=0)

    def _split_heads(self, y2d, b_size, seq_len, head_dim):
        y = y2d.reshape(b_size, seq_len, self.n_heads, head_dim)
        return jnp.transpose(y, (0, 2, 1, 3))  # (b, H, seq, head_dim)

    def __call__(self, q, k, v):
        b_size, sq, _ = q.shape
        nq = self.n_heads * self.d_k
        nv = self.n_heads * self.d_v

        if (q is k) and (k is v):
            # Self-attention: fused QKV projection in a single pallas_call.
            x2d = q.reshape(-1, self.d_model)
            y2d = pallas_linear(x2d, self.w_qkv, self.b_qkv)
            q2d = y2d[:, :nq]
            k2d = y2d[:, nq:2 * nq]
            v2d = y2d[:, 2 * nq:2 * nq + nv]
            q_s = self._split_heads(q2d, b_size, sq, self.d_k)
            k_s = self._split_heads(k2d, b_size, sq, self.d_k)
            v_s = self._split_heads(v2d, b_size, sq, self.d_v)
            return q_s, k_s, v_s

        sk, sv = k.shape[1], v.shape[1]
        q2d = pallas_linear(q.reshape(-1, self.d_model), self.w_q, self.b_q)
        k2d = pallas_linear(k.reshape(-1, self.d_model), self.w_k, self.b_k)
        v2d = pallas_linear(v.reshape(-1, self.d_model), self.w_v, self.b_v)
        q_s = self._split_heads(q2d, b_size, sq, self.d_k)
        k_s = self._split_heads(k2d, b_size, sk, self.d_k)
        v_s = self._split_heads(v2d, b_size, sv, self.d_v)
        return q_s, k_s, v_s


if __name__ == "__main__":
    # Small shapes consistent with the module's forward.
    batch, seq, d_model = 2, 8, 32
    n_heads, d_k, d_v = 4, 8, 8

    key = jax.random.PRNGKey(0)
    kq, kk_, kv, kp = jax.random.split(key, 4)
    q = jax.random.normal(kq, (batch, seq, d_model), jnp.float32)
    k = jax.random.normal(kk_, (batch, seq, d_model), jnp.float32)
    v = jax.random.normal(kv, (batch, seq, d_model), jnp.float32)

    mha = MultiHeadAttentionProjections(d_k, d_v, d_model, n_heads, dropout=0.1, key=kp)

    # Reference: same bf16 input/weight rounding, f32 accumulation.
    def ref_proj(x, w, b, head_dim):
        xb = x.reshape(-1, d_model).astype(jnp.bfloat16).astype(jnp.float32)
        wb = w.astype(jnp.bfloat16).astype(jnp.float32)
        y = xb @ wb + b
        y = y.reshape(batch, seq, n_heads, head_dim)
        return jnp.transpose(y, (0, 2, 1, 3))

    # --- Path 1: generic forward with distinct q, k, v (three launches) ---
    q_s, k_s, v_s = mha(q, k, v)
    jax.block_until_ready((q_s, k_s, v_s))

    assert q_s.shape == (batch, n_heads, seq, d_k)
    assert k_s.shape == (batch, n_heads, seq, d_k)
    assert v_s.shape == (batch, n_heads, seq, d_v)
    assert jnp.allclose(q_s, ref_proj(q, mha.w_q, mha.b_q, d_k), atol=1e-4, rtol=1e-4)
    assert jnp.allclose(k_s, ref_proj(k, mha.w_k, mha.b_k, d_k), atol=1e-4, rtol=1e-4)
    assert jnp.allclose(v_s, ref_proj(v, mha.w_v, mha.b_v, d_v), atol=1e-4, rtol=1e-4)

    # --- Path 2: self-attention forward (fused single-launch QKV) ---
    q_f, k_f, v_f = mha(q, q, q)
    jax.block_until_ready((q_f, k_f, v_f))

    assert q_f.shape == (batch, n_heads, seq, d_k)
    assert k_f.shape == (batch, n_heads, seq, d_k)
    assert v_f.shape == (batch, n_heads, seq, d_v)
    assert jnp.allclose(q_f, ref_proj(q, mha.w_q, mha.b_q, d_k), atol=1e-4, rtol=1e-4)
    assert jnp.allclose(k_f, ref_proj(q, mha.w_k, mha.b_k, d_k), atol=1e-4, rtol=1e-4)
    assert jnp.allclose(v_f, ref_proj(q, mha.w_v, mha.b_v, d_v), atol=1e-4, rtol=1e-4)

    print("KERNEL_OK")
</pallas_src>

<mosaic_0001>
module attributes {stable_mosaic.version = 11 : i64} {
  func.func @_linear_bias_kernel(%arg0: i32, %arg1: i32, %arg2: i32, %arg3: memref<16x32xbf16, #tpu.memory_space<vmem>>, %arg4: memref<32x128xbf16, #tpu.memory_space<vmem>>, %arg5: memref<1x128xf32, #tpu.memory_space<vmem>>, %arg6: memref<16x128xf32, #tpu.memory_space<vmem>>, %arg7: memref<16x128xf32, #tpu.memory_space<vmem>>) attributes {dimension_semantics = [#tpu.dimension_semantics<parallel>, #tpu.dimension_semantics<parallel>, #tpu.dimension_semantics<arbitrary>], iteration_bounds = array<i64: 1, 1, 1>, scalar_prefetch = 0 : i64, scratch_operands = 1 : i64, tpu.core_type = #tpu.core_type<tc>, window_params = [{transform_indices = @transform_0, window_bounds = array<i64: 16, 32>}, {transform_indices = @transform_1, window_bounds = array<i64: 32, 128>}, {transform_indices = @transform_2, window_bounds = array<i64: 1, 128>}, {transform_indices = @transform_3, window_bounds = array<i64: 16, 128>}]} {
    %c0_i32 = arith.constant 0 : i32
    %0 = arith.cmpi eq, %arg2, %c0_i32 : i32
    %1 = arith.extui %0 : i1 to i32
    %c0_i32_0 = arith.constant 0 : i32
    %2 = arith.cmpi ne, %1, %c0_i32_0 : i32
    scf.if %2 {
      %cst_10 = arith.constant 0.000000e+00 : f32
      %12 = vector.broadcast %cst_10 : f32 to vector<16x128xf32>
      %c0_11 = arith.constant 0 : index
      %c0_12 = arith.constant 0 : index
      %13 = vector.load %arg7[%c0_11, %c0_12] : memref<16x128xf32, #tpu.memory_space<vmem>>, vector<16x128xf32>
      tpu.vector_store %arg7[%c0_11, %c0_12], %12 {strides = array<i32>} : memref<16x128xf32, #tpu.memory_space<vmem>>, vector<16x128xf32>,
    } else {
    }
    %c0 = arith.constant 0 : index
    %c0_1 = arith.constant 0 : index
    %3 = vector.load %arg7[%c0, %c0_1] : memref<16x128xf32, #tpu.memory_space<vmem>>, vector<16x128xf32>
    %c0_2 = arith.constant 0 : index
    %c0_3 = arith.constant 0 : index
    %4 = vector.load %arg3[%c0_2, %c0_3] : memref<16x32xbf16, #tpu.memory_space<vmem>>, vector<16x32xbf16>
    %c0_4 = arith.constant 0 : index
    %c0_5 = arith.constant 0 : index
    %5 = vector.load %arg4[%c0_4, %c0_5] : memref<32x128xbf16, #tpu.memory_space<vmem>>, vector<32x128xbf16>
    %cst = arith.constant dense<0.000000e+00> : vector<16x128xf32>
    %6 = tpu.matmul %4, %5, %cst {dimension_numbers = #tpu.dot_dimension_numbers<[1], [0], [0], [1], [0, 0, 1, 1], [], []>} : vector<16x32xbf16>, vector<32x128xbf16>, vector<16x128xf32> -> vector<16x128xf32>
    %7 = arith.addf %3, %6 : vector<16x128xf32>
    %c0_6 = arith.constant 0 : index
    %c0_7 = arith.constant 0 : index
    %8 = vector.load %arg7[%c0_6, %c0_7] : memref<16x128xf32, #tpu.memory_space<vmem>>, vector<16x128xf32>
    tpu.vector_store %arg7[%c0_6, %c0_7], %7 {strides = array<i32>} : memref<16x128xf32, #tpu.memory_space<vmem>>, vector<16x128xf32>,
    %c0_i32_8 = arith.constant 0 : i32
    %9 = arith.cmpi eq, %arg2, %c0_i32_8 : i32
    %10 = arith.extui %9 : i1 to i32
    %c0_i32_9 = arith.constant 0 : i32
    %11 = arith.cmpi ne, %10, %c0_i32_9 : i32
    scf.if %11 {
      %c0_10 = arith.constant 0 : index
      %c0_11 = arith.constant 0 : index
      %12 = vector.load %arg7[%c0_10, %c0_11] : memref<16x128xf32, #tpu.memory_space<vmem>>, vector<16x128xf32>
      %c0_12 = arith.constant 0 : index
      %c0_13 = arith.constant 0 : index
      %13 = vector.load %arg5[%c0_12, %c0_13] : memref<1x128xf32, #tpu.memory_space<vmem>>, vector<1x128xf32>
      %14 = vector.broadcast %13 : vector<1x128xf32> to vector<16x128xf32>
      %15 = arith.addf %12, %14 : vector<16x128xf32>
      %c0_14 = arith.constant 0 : index
      %c0_15 = arith.constant 0 : index
      %16 = vector.load %arg6[%c0_14, %c0_15] : memref<16x128xf32, #tpu.memory_space<vmem>>, vector<16x128xf32>
      tpu.vector_store %arg6[%c0_14, %c0_15], %15 {strides = array<i32>} : memref<16x128xf32, #tpu.memory_space<vmem>>, vector<16x128xf32>,
    } else {
    }
    return
  }
  func.func @transform_0(%arg0: i32, %arg1: i32, %arg2: i32) -> (i32, i32) {
    %c0_i32 = arith.constant 0 : i32
    return %arg0, %arg2 : i32, i32
  }
  func.func @transform_1(%arg0: i32, %arg1: i32, %arg2: i32) -> (i32, i32) {
    %c0_i32 = arith.constant 0 : i32
    return %arg2, %arg1 : i32, i32
  }
  func.func @transform_2(%arg0: i32, %arg1: i32, %arg2: i32) -> (i32, i32) {
    %c0_i32 = arith.constant 0 : i32
    %c0_i32_0 = arith.constant 0 : i32
    return %c0_i32, %arg1 : i32, i32
  }
  func.func @transform_3(%arg0: i32, %arg1: i32, %arg2: i32) -> (i32, i32) {
    %c0_i32 = arith.constant 0 : i32
    return %arg0, %arg1 : i32, i32
  }
}

</mosaic_0001>

<llo_original>
// kernel: tpu_custom_call.1
$region0: #{tpu_custom_call.1}
  #allocation0 [shape = 'u32[]', space=smem, size = 0x4, offset = 0x4, fixed_abs, tag = 'smem constant byte address 0x4 - core index']
  #allocation1 [shape = 'u32[144,128]{1,0:T(1,128)}', space=vmem, size = 0x12000, scoped, tag = 'internal scratch']
  #allocation2 [shape = 'f32[16,128]{1,0:T(8,128)}', space=vmem, size = 0x2000, scoped, tag = 'scratch operand']
  %s0 = inlined_call_operand.hbm [shape: bf16[16,32], index: 0, kind: input, shape index: {}]
  %s1 = inlined_call_operand.hbm [shape: bf16[32,128], index: 1, kind: input, shape index: {}]
  %s2 = inlined_call_operand.vmem [shape: f32[1,128], index: 2, kind: input, shape index: {}]
  %s3 = inlined_call_operand.hbm [shape: f32[16,128], index: 3, kind: output, shape index: {}]
  %s4 = sld [smem:[#allocation0]]
  $region38: #{tpu_custom_call.1} parent=0
    _
  %s6 = ssub.s32 1, %s4
  %s7 = scalar_select 0, %s6, %s4
  $region1: #{tpu_custom_call.1} parent=0
    #allocation3 [shape = 'u8[4096]{0}', space=vmem, size = 0x1000, scoped, tag = 'input window, operand 0, single buffered']
    #allocation4 [shape = 's32[1]{0}', space=sflag, size = 0x4, scoped, tag = 'scoped memory for tpu_custom_call.1']
    #allocation5 [shape = 's32[1]{0}', space=sflag, size = 0x4, scoped, tag = 'scoped memory for tpu_custom_call.1']
    #allocation6 [shape = 'u8[8192]{0}', space=vmem, size = 0x2000, scoped, tag = 'input window, operand 1, single buffered']
    #allocation7 [shape = 's32[1]{0}', space=sflag, size = 0x4, scoped, tag = 'scoped memory for tpu_custom_call.1']
    #allocation8 [shape = 'u8[8192]{0}', space=vmem, size = 0x2000, scoped, tag = 'output window, operand 0, single buffered']
    %8 = vsyncpa [#allocation4], 0
    %9 = vsyncpa [#allocation7], 0
    %10 = vsyncpa [#allocation5], 0
    // Predicated region
    $region2: #{tpu_custom_call.1} parent=1 // pred_check
      _
    $region3: #{tpu_custom_call.1} parent=1 // pred_check_branch
      %12 = sbr.rel (0) target = $region5
    $region4: #{tpu_custom_call.1} parent=1 // pred_region
      %s14 = ssub.s32 128, 128
      %15 = vsyncadd [#allocation4], %s14
      %s16 = sshll.u32 [#allocation3], 4
      %s17 = int_to_ptr.vmem [resolvable:$true] %s16
      %22 = dma.hbm_to_vmem [thread:$0]  %s0, 128, %s17, [#allocation4], 64, 64, 4
    $region5: #{tpu_custom_call.1} parent=1 // pred_fallthru
      _
    // Predicated region
    $region6: #{tpu_custom_call.1} parent=1 // pred_check
      _
    $region7: #{tpu_custom_call.1} parent=1 // pred_check_branch
      %24 = sbr.rel (0) target = $region9
    $region8: #{tpu_custom_call.1} parent=1 // pred_region
      %s26 = ssub.s32 256, 256
      %27 = vsyncadd [#allocation7], %s26
      %s28 = sshll.u32 [#allocation6], 4
      %s29 = int_to_ptr.vmem [resolvable:$true] %s28
      %34 = dma.hbm_to_vmem [thread:$0]  %s1, 256, %s29, [#allocation7], 64, 64, 4
    $region9: #{tpu_custom_call.1} parent=1 // pred_fallthru
      _
    // Predicated region
    $region10: #{tpu_custom_call.1} parent=1 // pred_check
      _
    $region11: #{tpu_custom_call.1} parent=1 // pred_check_branch
      %36 = sbr.rel (0) target = $region13
    $region12: #{tpu_custom_call.1} parent=1 // pred_region
      _
    $region13: #{tpu_custom_call.1} parent=1 // pred_fallthru
      _
    // Predicated region
    $region14: #{tpu_custom_call.1} parent=1 // pred_check
      _
    $region15: #{tpu_custom_call.1} parent=1 // pred_check_branch
      %38 = sbr.rel (0) target = $region17
    $region16: #{tpu_custom_call.1} parent=1 // pred_region
      %39 = dma.done [#allocation4], 128
    $region17: #{tpu_custom_call.1} parent=1 // pred_fallthru
      _
    // Predicated region
    $region18: #{tpu_custom_call.1} parent=1 // pred_check
      _
    $region19: #{tpu_custom_call.1} parent=1 // pred_check_branch
      %41 = sbr.rel (0) target = $region21
    $region20: #{tpu_custom_call.1} parent=1 // pred_region
      %42 = dma.done [#allocation7], 256
    $region21: #{tpu_custom_call.1} parent=1 // pred_fallthru
      _
    %p44 = scmp.eq.s32.totalorder 0, 0
    // Predicated region
    $region22: #{tpu_custom_call.1} parent=1 // pred_check
      %p45 = pneg %p44
    $region23: #{tpu_custom_call.1} parent=1 // pred_check_branch
      %47 = sbr.rel (%p45) target = $region25
    $region24: #{tpu_custom_call.1} parent=1 // pred_region
      %48 = vst [vmem:[#allocation2] sm:$0xff] 0.0
      %49 = vst [vmem:[#allocation2 + $0x8] sm:$0xff] 0.0
    $region25: #{tpu_custom_call.1} parent=1 // pred_fallthru
      _
    %v50 = vld [vmem:[#allocation2] sm:$0xff]
    %v51 = vld [vmem:[#allocation2 + $0x8] sm:$0xff]
    %v52 = vld [vmem:[#allocation3] sm:$0xf]
    %v53 = vld [vmem:[#allocation3 + $0x4] sm:$0xf]
    %v54 = vld [vmem:[#allocation6] sm:$0xf]
    %v55 = vld [vmem:[#allocation6 + $0x4] sm:$0xf]
    %v56 = vld [vmem:[#allocation6 + $0x8] sm:$0xf]
    %v57 = vld [vmem:[#allocation6 + $0xc] sm:$0xf]
    %v60 = vunpack.c.l.b16 %v52
    %v61 = vunpack.c.l.b16 %v53
    %v62 = vpack.c.b16 %v61, %v60
    %v67 = vunpack.c.l.b16 %v54
    %v68 = vunpack.c.l.b16 %v55
    %v69 = vunpack.c.l.b16 %v56
    %v70 = vunpack.c.l.b16 %v57
    %v71 = vpack.c.b16 %v68, %v67
    %v72 = vpack.c.b16 %v70, %v69
    %vm75 = vcmask 261120
    %v77 = vsel %vm75, %v62, 0
    %79 = vmatprep.subr.bf16.mxu0 0
    %80 = vmatpush1.bf16.msra.mxu0 %v71
    %81 = vmatprep.subr.bf16.mxu0 0
    %82 = vmatpush1.bf16.msra.mxu0 %v72
    %83 = vmatprep.subr.bf16.mxu0 0
    %84 = vmatpush1.bf16.msra.mxu0 0
    %85 = vmatprep.subr.bf16.mxu0 0
    %86 = vmatpush1.bf16.msra.mxu0 0
    %87 = vmatprep.subr.bf16.mxu0 0
    %88 = vmatpush1.bf16.msra.mxu0 0
    %89 = vmatprep.subr.bf16.mxu0 0
    %90 = vmatpush1.bf16.msra.mxu0 0
    %91 = vmatprep.subr.bf16.mxu0 0
    %92 = vmatpush1.bf16.msra.mxu0 0
    %93 = vmatprep.subr.bf16.mxu0 0
    %94 = vmatpush1.bf16.msra.mxu0 0
    %95 = vmatprep.subr.bf16.mxu0 0
    %96 = vmatpush1.bf16.msra.mxu0 0
    %97 = vmatprep.subr.bf16.mxu0 0
    %98 = vmatpush1.bf16.msra.mxu0 0
    %99 = vmatprep.subr.bf16.mxu0 0
    %100 = vmatpush1.bf16.msra.mxu0 0
    %101 = vmatprep.subr.bf16.mxu0 0
    %102 = vmatpush1.bf16.msra.mxu0 0
    %103 = vmatprep.subr.bf16.mxu0 0
    %104 = vmatpush1.bf16.msra.mxu0 0
    %105 = vmatprep.subr.bf16.mxu0 0
    %106 = vmatpush1.bf16.msra.mxu0 0
    %107 = vmatprep.subr.bf16.mxu0 0
    %108 = vmatpush1.bf16.msra.mxu0 0
    %109 = vmatprep.subr.bf16.mxu0 0
    %110 = vmatpush1.bf16.msra.mxu0 0
    %111 = vmatprep.mubr.bf16.mxu0 0
    %112 = vmatmul.mubr.bf16.gmra.mrb[0].mxu0 %v77
    %v113 = vpop.f32.mrb[0].mxu0
    %v114 = vadd.f32 0.0, %v113
    %v115 = vpop.f32.mrb[0].mxu0
    %v116 = vpop.f32.mrb[0].mxu0
    %v117 = vadd.f32 0.0, %v116
    %v118 = vpop.f32.mrb[0].mxu0
    %119 = vdwg.mxu0
    %v120 = vadd.f32 %v50, %v114
    %v121 = vadd.f32 %v51, %v117
    %122 = vst [vmem:[#allocation2] sm:$0xff] %v120
    %123 = vst [vmem:[#allocation2 + $0x8] sm:$0xff] %v121
    // Predicated region
    $region26: #{tpu_custom_call.1} parent=1 // pred_check
      %p124 = pneg %p44
    $region27: #{tpu_custom_call.1} parent=1 // pred_check_branch
      %126 = sbr.rel (%p124) target = $region29
    $region28: #{tpu_custom_call.1} parent=1 // pred_region
      %v127 = vld [vmem:[#allocation2] sm:$0xff]
      %v128 = vld [vmem:[#allocation2 + $0x8] sm:$0xff]
      %v129 = vld [vmem:[%s2] sm:$0x1]
      %v131 = vlaneseq
      %v132 = vshrl.u32 %v131, 7
      %v133 = vsub.s32 0, %v132
      %v134 = vrot.slane %v129, %v133
      %v136 = vadd.f32 %v127, %v134
      %v137 = vadd.f32 %v128, %v134
      %138 = vst [vmem:[#allocation8] sm:$0xff] %v136
      %139 = vst [vmem:[#allocation8 + $0x8] sm:$0xff] %v137
    $region29: #{tpu_custom_call.1} parent=1 // pred_fallthru
      _
    // Predicated region
    $region30: #{tpu_custom_call.1} parent=1 // pred_check
      _
    $region31: #{tpu_custom_call.1} parent=1 // pred_check_branch
      %141 = sbr.rel (0) target = $region33
    $region32: #{tpu_custom_call.1} parent=1 // pred_region
      %s143 = ssub.s32 256, 256
      %144 = vsyncadd [#allocation5], %s143
      %s145 = sshll.u32 [#allocation8], 4
      %s146 = int_to_ptr.vmem [resolvable:$true] %s145
      %151 = dma.vmem_to_hbm [thread:$0]  %s146, 256, %s3, [#allocation5], 128, 128, 8
    $region33: #{tpu_custom_call.1} parent=1 // pred_fallthru
      _
    // Predicated region
    $region34: #{tpu_custom_call.1} parent=1 // pred_check
      _
    $region35: #{tpu_custom_call.1} parent=1 // pred_check_branch
      %153 = sbr.rel (0) target = $region37
    $region36: #{tpu_custom_call.1} parent=1 // pred_region
      %154 = dma.done [#allocation5], 256
    $region37: #{tpu_custom_call.1} parent=1 // pred_fallthru
      _
    %155 = vsyncpa [#allocation4], 1
    %156 = vsyncpa [#allocation7], 1
    %157 = vsyncpa [#allocation5], 1

</llo_original>
